<compile_context>
chip_gen: v7x
topology: tpu7x:2x2x1
jax: 0.10.0
libtpu: 0.0.40
codegen_flags: <defaults>
</compile_context>

<pallas_src>
import jax
import jax.numpy as jnp
from jax.experimental import pallas as pl
from jax.experimental.pallas import tpu as pltpu

EMBED_CLASS = 65          # vocabulary size from the module __init__
EMBED_DIM = 512           # embedding width from the module __init__
PADDED_VOCAB = 128        # pad 65 -> 128 so the one-hot matmul K dim is MXU/lane friendly


def _embedding_kernel(idx_ref, table_ref, out_ref):
    # idx_ref:   (TM, 1) int32                      -- tile of flattened indices
    # table_ref: (PADDED_VOCAB, EMBED_DIM)          -- full (padded) embedding table
    # out_ref:   (TM, EMBED_DIM)                    -- lane-dense output tile
    #
    # NOTE: on the final (partial) grid block the trailing rows of idx_ref hold
    # unspecified values; their one-hot rows produce garbage-but-finite output
    # rows whose stores are masked by the pipeline, so the result is correct.
    # Do not rely on those rows containing anything meaningful.
    idx = idx_ref[...]                                              # (TM, 1)
    tm = idx.shape[0]
    iota = jax.lax.broadcasted_iota(jnp.int32, (tm, PADDED_VOCAB), 1)
    # Build the one-hot directly in the table dtype (bf16 table -> single-pass
    # bf16 MXU matmul; 1.0 is exact in bf16 so the lookup stays exact).
    one_hot = (iota == idx).astype(table_ref.dtype)                 # (TM, PADDED_VOCAB)
    # Fused: MXU f32 accumulation is cast and written straight into out_ref,
    # no separate (TM, EMBED_DIM) accumulator scratch.
    out_ref[...] = jnp.dot(
        one_hot, table_ref[...], preferred_element_type=jnp.float32
    ).astype(out_ref.dtype)


def prepare_flow_embedding_table(table, dtype=jnp.float32):
    """Cast + zero-pad the (65, 512) nn.Embedding weight to (128, 512).

    Call this ONCE outside the hot loop and reuse the result for every
    optical_flow_embedding() call. Use dtype=jnp.bfloat16 for the fast path
    (halves table + output HBM traffic; lookup stays exact, only the stored
    precision changes vs the PyTorch f32 module).
    """
    assert table.shape == (EMBED_CLASS, EMBED_DIM)
    return jnp.pad(table.astype(dtype),
                   ((0, PADDED_VOCAB - EMBED_CLASS), (0, 0)))


def optical_flow_embedding(x, table_padded, *, tm=2048, out_dtype=None):
    """x: int32 [B, S] of ids in [0, 65); table_padded: prepared (128, 512) table.

    Returns [B, S, 512] in out_dtype (defaults to table_padded.dtype).

    tm is the row tile (must be a multiple of 8). tm=2048 + vmem_limit_bytes=32 MiB
    is a good default on v5e/v6e/v7x; on v7x you may raise tm to 4096 (and the
    VMEM limit to ~48 MiB) as long as B*S still leaves >= 2 grid blocks so both
    TensorCores stay busy under dimension_semantics=("parallel",).

    Out-of-range ids (>= 65, negative, or >= 128) silently produce zero rows
    instead of erroring like nn.Embedding.
    """
    b, s = x.shape
    n = b * s
    assert table_padded.shape == (PADDED_VOCAB, EMBED_DIM)
    assert tm % 8 == 0
    if out_dtype is None:
        out_dtype = table_padded.dtype

    # If the whole problem is smaller than one tile, shrink the block to the
    # full array extent (a block dim equal to the array dim is always legal).
    tm_eff = min(tm, n)
    num_blocks = pl.cdiv(n, tm_eff)

    idx_flat = x.reshape(n, 1).astype(jnp.int32)

    out_flat = pl.pallas_call(
        _embedding_kernel,
        out_shape=jax.ShapeDtypeStruct((n, EMBED_DIM), out_dtype),
        grid_spec=pltpu.PrefetchScalarGridSpec(
            num_scalar_prefetch=0,
            grid=(num_blocks,),
            in_specs=[
                # (tm, 1) int32 indices. Kept in this layout (no XLU transpose
                # needed to line indices up with output sublanes); note it is
                # lane-padded to 128 in VMEM, i.e. tm*512 B per buffer.
                pl.BlockSpec((tm_eff, 1), lambda i: (i, 0)),
                # Constant table block (index_map always (0,0)): single-buffer
                # it to free VMEM and skip pointless double-buffer bookkeeping.
                pl.BlockSpec((PADDED_VOCAB, EMBED_DIM), lambda i: (0, 0),
                             pipeline_mode=pl.Buffered(1)),
            ],
            # Partial final block is handled by masked stores -> no padded
            # output and no post-kernel slice/copy.
            out_specs=pl.BlockSpec((tm_eff, EMBED_DIM), lambda i: (i, 0)),
        ),
        compiler_params=pltpu.CompilerParams(
            dimension_semantics=("parallel",),   # shards grid across TCs on v7x
            vmem_limit_bytes=32 * 1024 * 1024,   # tm=2048 f32 needs ~15 MiB
        ),
    )(idx_flat, table_padded)

    return out_flat.reshape(b, s, EMBED_DIM)


if __name__ == "__main__":
    key = jax.random.PRNGKey(0)
    k_table, k_idx, k_idx2 = jax.random.split(key, 3)

    # Deterministic parameter init: nn.Embedding default is N(0, 1).
    table = jax.random.normal(k_table, (EMBED_CLASS, EMBED_DIM), dtype=jnp.float32)

    # Prepare (cast + pad) the table ONCE, outside the per-call path.
    table_f32 = prepare_flow_embedding_table(table, dtype=jnp.float32)
    table_bf16 = prepare_flow_embedding_table(table, dtype=jnp.bfloat16)

    # Small example input: batch=2, seq=8 of displacement-class indices
    # (single partial block: n=16 < tm).
    x = jax.random.randint(k_idx, (2, 8), 0, EMBED_CLASS, dtype=jnp.int32)
    out = jax.block_until_ready(optical_flow_embedding(x, table_f32))
    ref = jnp.take(table, x, axis=0)
    assert out.shape == (2, 8, EMBED_DIM)
    assert out.dtype == jnp.float32
    assert jnp.allclose(out, ref, atol=1e-5, rtol=1e-5)

    # Second check: multiple grid steps plus a ragged (masked-store) final block
    # with no output padding: n = 4*600 = 2400 -> blocks of 2048 + 352.
    x2 = jax.random.randint(k_idx2, (4, 600), 0, EMBED_CLASS, dtype=jnp.int32)
    out2 = jax.block_until_ready(optical_flow_embedding(x2, table_f32))
    ref2 = jnp.take(table, x2, axis=0)
    assert out2.shape == (4, 600, EMBED_DIM)
    assert jnp.allclose(out2, ref2, atol=1e-5, rtol=1e-5)

    # Fast bf16 path: bf16 table + bf16 output (exact vs take()-then-cast).
    out3 = jax.block_until_ready(optical_flow_embedding(x2, table_bf16))
    ref3 = jnp.take(table.astype(jnp.bfloat16), x2, axis=0)
    assert out3.dtype == jnp.bfloat16
    assert jnp.allclose(out3.astype(jnp.float32), ref3.astype(jnp.float32))

    print("KERNEL_OK")
</pallas_src>

<mosaic_0001>
module attributes {stable_mosaic.version = 11 : i64} {
  func.func @_embedding_kernel(%arg0: i32, %arg1: memref<16x1xi32, #tpu.memory_space<vmem>>, %arg2: memref<128x512xf32, #tpu.memory_space<vmem>>, %arg3: memref<16x512xf32, #tpu.memory_space<vmem>>) attributes {dimension_semantics = [#tpu.dimension_semantics<parallel>], iteration_bounds = array<i64: 1>, scalar_prefetch = 0 : i64, scratch_operands = 0 : i64, tpu.core_type = #tpu.core_type<tc>, window_params = [{transform_indices = @transform_0, window_bounds = array<i64: 16, 1>}, {pipeline_mode = #tpu.pipeline_mode<synchronous>, transform_indices = @transform_1, window_bounds = array<i64: 128, 512>}, {transform_indices = @transform_2, window_bounds = array<i64: 16, 512>}]} {
    %c0 = arith.constant 0 : index
    %c0_0 = arith.constant 0 : index
    %0 = vector.load %arg1[%c0, %c0_0] : memref<16x1xi32, #tpu.memory_space<vmem>>, vector<16x1xi32>
    %1 = tpu.iota {dimensions = array<i32: 1>} : vector<16x128xi32>
    %2 = vector.broadcast %0 : vector<16x1xi32> to vector<16x128xi32>
    %3 = arith.cmpi eq, %1, %2 : vector<16x128xi32>
    %4 = arith.extui %3 : vector<16x128xi1> to vector<16x128xi32>
    %5 = arith.sitofp %4 : vector<16x128xi32> to vector<16x128xf32>
    %c0_1 = arith.constant 0 : index
    %c0_2 = arith.constant 0 : index
    %6 = vector.load %arg2[%c0_1, %c0_2] : memref<128x512xf32, #tpu.memory_space<vmem>>, vector<128x512xf32>
    %cst = arith.constant dense<0.000000e+00> : vector<16x512xf32>
    %7 = tpu.matmul %5, %6, %cst {dimension_numbers = #tpu.dot_dimension_numbers<[1], [0], [0], [1], [0, 0, 1, 1], [], []>} : vector<16x128xf32>, vector<128x512xf32>, vector<16x512xf32> -> vector<16x512xf32>
    %c0_3 = arith.constant 0 : index
    %c0_4 = arith.constant 0 : index
    %8 = vector.load %arg3[%c0_3, %c0_4] : memref<16x512xf32, #tpu.memory_space<vmem>>, vector<16x512xf32>
    tpu.vector_store %arg3[%c0_3, %c0_4], %7 {strides = array<i32>} : memref<16x512xf32, #tpu.memory_space<vmem>>, vector<16x512xf32>,
    return
  }
  func.func @transform_0(%arg0: i32) -> (i32, i32) {
    %c0_i32 = arith.constant 0 : i32
    %c0_i32_0 = arith.constant 0 : i32
    return %arg0, %c0_i32 : i32, i32
  }
  func.func @transform_1(%arg0: i32) -> (i32, i32) {
    %c0_i32 = arith.constant 0 : i32
    %c0_i32_0 = arith.constant 0 : i32
    %c0_i32_1 = arith.constant 0 : i32
    return %c0_i32, %c0_i32_0 : i32, i32
  }
  func.func @transform_2(%arg0: i32) -> (i32, i32) {
    %c0_i32 = arith.constant 0 : i32
    %c0_i32_0 = arith.constant 0 : i32
    return %arg0, %c0_i32 : i32, i32
  }
}

</mosaic_0001>

<llo_original>
// kernel: tpu_custom_call.1
$region0: #{tpu_custom_call.1}
  #allocation0 [shape = 'u32[]', space=smem, size = 0x4, offset = 0x4, fixed_abs, tag = 'smem constant byte address 0x4 - core index']
  #allocation1 [shape = 'u32[144,128]{1,0:T(1,128)}', space=vmem, size = 0x12000, scoped, tag = 'internal scratch']
  %s0 = inlined_call_operand.vmem [shape: s32[16,1], index: 0, kind: input, shape index: {}]
  %s1 = inlined_call_operand.hbm [shape: f32[128,512], index: 1, kind: input, shape index: {}]
  %s2 = inlined_call_operand.hbm [shape: f32[16,512], index: 2, kind: output, shape index: {}]
  %s3 = sld [smem:[#allocation0]]
  $region22: #{tpu_custom_call.1} parent=0
    _
  %s5 = ssub.s32 1, %s3
  %s6 = scalar_select 0, %s5, %s3
  $region1: #{tpu_custom_call.1} parent=0
    #allocation2 [shape = 'u8[262144]{0}', space=vmem, size = 0x40000, scoped, tag = 'input window, operand 1, single buffered']
    #allocation3 [shape = 's32[1]{0}', space=sflag, size = 0x4, scoped, tag = 'scoped memory for tpu_custom_call.1']
    #allocation4 [shape = 's32[1]{0}', space=sflag, size = 0x4, scoped, tag = 'scoped memory for tpu_custom_call.1']
    #allocation5 [shape = 'u8[32768]{0}', space=vmem, size = 0x8000, scoped, tag = 'output window, operand 0, single buffered']
    %7 = vsyncpa [#allocation3], 0
    %8 = vsyncpa [#allocation4], 0
    // Predicated region
    $region2: #{tpu_custom_call.1} parent=1 // pred_check
      _
    $region3: #{tpu_custom_call.1} parent=1 // pred_check_branch
      %10 = sbr.rel (0) target = $region5
    $region4: #{tpu_custom_call.1} parent=1 // pred_region
      _
    $region5: #{tpu_custom_call.1} parent=1 // pred_fallthru
      _
    // Predicated region
    $region6: #{tpu_custom_call.1} parent=1 // pred_check
      _
    $region7: #{tpu_custom_call.1} parent=1 // pred_check_branch
      %12 = sbr.rel (0) target = $region9
    $region8: #{tpu_custom_call.1} parent=1 // pred_region
      %s14 = ssub.s32 8192, 8192
      %15 = vsyncadd [#allocation3], %s14
      %s16 = sshll.u32 [#allocation2], 4
      %s17 = int_to_ptr.vmem [resolvable:$true] %s16
      %22 = dma.hbm_to_vmem [thread:$0]  %s1, 8192, %s17, [#allocation3], 512, 512, 32
    $region9: #{tpu_custom_call.1} parent=1 // pred_fallthru
      _
    // Predicated region
    $region10: #{tpu_custom_call.1} parent=1 // pred_check
      _
    $region11: #{tpu_custom_call.1} parent=1 // pred_check_branch
      %24 = sbr.rel (0) target = $region13
    $region12: #{tpu_custom_call.1} parent=1 // pred_region
      %25 = dma.done [#allocation3], 8192
    $region13: #{tpu_custom_call.1} parent=1 // pred_fallthru
      _
    %v26 = vld [vmem:[%s0] sm:$0xff]
    %v27 = vld [vmem:[%s0 + $0x8] sm:$0xff]
    %v28 = vlaneseq
    %v29 = vand.u32 %v28, 127
    %30 = vset.pattern.permute.xlu0 0
    %31 = vperm.xlu0 %30, %v26
    %v32 = vpop.permute.xlu0 %31
    %33 = vset.pattern.permute.xlu0 0
    %34 = vperm.xlu0 %33, %v27
    %v35 = vpop.permute.xlu0 %34
    %vm36 = vcmp.eq.s32.totalorder %v29, %v32
    %vm37 = vcmp.eq.s32.totalorder %v29, %v35
    %v38 = vsel %vm36, 1, 0
    %v39 = vsel %vm37, 1, 0
    %v40 = vcvt.s32.f32 %v38
    %v41 = vcvt.s32.f32 %v39
    %v42 = vld [vmem:[#allocation2] sm:$0xff]
    %v43 = vld [vmem:[#allocation2 + $0x8] sm:$0xff]
    %v44 = vld [vmem:[#allocation2 + $0x10] sm:$0xff]
    %v45 = vld [vmem:[#allocation2 + $0x18] sm:$0xff]
    %v46 = vld [vmem:[#allocation2 + $0x20] sm:$0xff]
    %v47 = vld [vmem:[#allocation2 + $0x28] sm:$0xff]
    %v48 = vld [vmem:[#allocation2 + $0x30] sm:$0xff]
    %v49 = vld [vmem:[#allocation2 + $0x38] sm:$0xff]
    %v50 = vld [vmem:[#allocation2 + $0x40] sm:$0xff]
    %v51 = vld [vmem:[#allocation2 + $0x48] sm:$0xff]
    %v52 = vld [vmem:[#allocation2 + $0x50] sm:$0xff]
    %v53 = vld [vmem:[#allocation2 + $0x58] sm:$0xff]
    %v54 = vld [vmem:[#allocation2 + $0x60] sm:$0xff]
    %v55 = vld [vmem:[#allocation2 + $0x68] sm:$0xff]
    %v56 = vld [vmem:[#allocation2 + $0x70] sm:$0xff]
    %v57 = vld [vmem:[#allocation2 + $0x78] sm:$0xff]
    %v58 = vld [vmem:[#allocation2 + $0x80] sm:$0xff]
    %v59 = vld [vmem:[#allocation2 + $0x88] sm:$0xff]
    %v60 = vld [vmem:[#allocation2 + $0x90] sm:$0xff]
    %v61 = vld [vmem:[#allocation2 + $0x98] sm:$0xff]
    %v62 = vld [vmem:[#allocation2 + $0xa0] sm:$0xff]
    %v63 = vld [vmem:[#allocation2 + $0xa8] sm:$0xff]
    %v64 = vld [vmem:[#allocation2 + $0xb0] sm:$0xff]
    %v65 = vld [vmem:[#allocation2 + $0xb8] sm:$0xff]
    %v66 = vld [vmem:[#allocation2 + $0xc0] sm:$0xff]
    %v67 = vld [vmem:[#allocation2 + $0xc8] sm:$0xff]
    %v68 = vld [vmem:[#allocation2 + $0xd0] sm:$0xff]
    %v69 = vld [vmem:[#allocation2 + $0xd8] sm:$0xff]
    %v70 = vld [vmem:[#allocation2 + $0xe0] sm:$0xff]
    %v71 = vld [vmem:[#allocation2 + $0xe8] sm:$0xff]
    %v72 = vld [vmem:[#allocation2 + $0xf0] sm:$0xff]
    %v73 = vld [vmem:[#allocation2 + $0xf8] sm:$0xff]
    %v74 = vld [vmem:[#allocation2 + $0x100] sm:$0xff]
    %v75 = vld [vmem:[#allocation2 + $0x108] sm:$0xff]
    %v76 = vld [vmem:[#allocation2 + $0x110] sm:$0xff]
    %v77 = vld [vmem:[#allocation2 + $0x118] sm:$0xff]
    %v78 = vld [vmem:[#allocation2 + $0x120] sm:$0xff]
    %v79 = vld [vmem:[#allocation2 + $0x128] sm:$0xff]
    %v80 = vld [vmem:[#allocation2 + $0x130] sm:$0xff]
    %v81 = vld [vmem:[#allocation2 + $0x138] sm:$0xff]
    %v82 = vld [vmem:[#allocation2 + $0x140] sm:$0xff]
    %v83 = vld [vmem:[#allocation2 + $0x148] sm:$0xff]
    %v84 = vld [vmem:[#allocation2 + $0x150] sm:$0xff]
    %v85 = vld [vmem:[#allocation2 + $0x158] sm:$0xff]
    %v86 = vld [vmem:[#allocation2 + $0x160] sm:$0xff]
    %v87 = vld [vmem:[#allocation2 + $0x168] sm:$0xff]
    %v88 = vld [vmem:[#allocation2 + $0x170] sm:$0xff]
    %v89 = vld [vmem:[#allocation2 + $0x178] sm:$0xff]
    %v90 = vld [vmem:[#allocation2 + $0x180] sm:$0xff]
    %v91 = vld [vmem:[#allocation2 + $0x188] sm:$0xff]
    %v92 = vld [vmem:[#allocation2 + $0x190] sm:$0xff]
    %v93 = vld [vmem:[#allocation2 + $0x198] sm:$0xff]
    %v94 = vld [vmem:[#allocation2 + $0x1a0] sm:$0xff]
    %v95 = vld [vmem:[#allocation2 + $0x1a8] sm:$0xff]
    %v96 = vld [vmem:[#allocation2 + $0x1b0] sm:$0xff]
    %v97 = vld [vmem:[#allocation2 + $0x1b8] sm:$0xff]
    %v98 = vld [vmem:[#allocation2 + $0x1c0] sm:$0xff]
    %v99 = vld [vmem:[#allocation2 + $0x1c8] sm:$0xff]
    %v100 = vld [vmem:[#allocation2 + $0x1d0] sm:$0xff]
    %v101 = vld [vmem:[#allocation2 + $0x1d8] sm:$0xff]
    %v102 = vld [vmem:[#allocation2 + $0x1e0] sm:$0xff]
    %v103 = vld [vmem:[#allocation2 + $0x1e8] sm:$0xff]
    %v104 = vld [vmem:[#allocation2 + $0x1f0] sm:$0xff]
    %v105 = vld [vmem:[#allocation2 + $0x1f8] sm:$0xff]
    %106 = vmatprep.subr.mxu0 %v43
    %107 = vmatpush1.msra.mxu0 %v42
    %108 = vmatprep.subr.mxu0 %v47
    %109 = vmatpush1.msra.mxu0 %v46
    %110 = vmatprep.subr.mxu0 %v51
    %111 = vmatpush1.msra.mxu0 %v50
    %112 = vmatprep.subr.mxu0 %v55
    %113 = vmatpush1.msra.mxu0 %v54
    %114 = vmatprep.subr.mxu0 %v59
    %115 = vmatpush1.msra.mxu0 %v58
    %116 = vmatprep.subr.mxu0 %v63
    %117 = vmatpush1.msra.mxu0 %v62
    %118 = vmatprep.subr.mxu0 %v67
    %119 = vmatpush1.msra.mxu0 %v66
    %120 = vmatprep.subr.mxu0 %v71
    %121 = vmatpush1.msra.mxu0 %v70
    %122 = vmatprep.subr.mxu0 %v75
    %123 = vmatpush1.msra.mxu0 %v74
    %124 = vmatprep.subr.mxu0 %v79
    %125 = vmatpush1.msra.mxu0 %v78
    %126 = vmatprep.subr.mxu0 %v83
    %127 = vmatpush1.msra.mxu0 %v82
    %128 = vmatprep.subr.mxu0 %v87
    %129 = vmatpush1.msra.mxu0 %v86
    %130 = vmatprep.subr.mxu0 %v91
    %131 = vmatpush1.msra.mxu0 %v90
    %132 = vmatprep.subr.mxu0 %v95
    %133 = vmatpush1.msra.mxu0 %v94
    %134 = vmatprep.subr.mxu0 %v99
    %135 = vmatpush1.msra.mxu0 %v98
    %136 = vmatprep.subr.mxu0 %v103
    %137 = vmatpush1.msra.mxu0 %v102
    %138 = vmatprep.subr.mxu0 0.0
    %139 = vmatpush1.msra.mxu0 0.0
    %140 = vmatprep.subr.mxu0 0.0
    %141 = vmatpush1.msra.mxu0 0.0
    %142 = vmatprep.subr.mxu0 0.0
    %143 = vmatpush1.msra.mxu0 0.0
    %144 = vmatprep.subr.mxu0 0.0
    %145 = vmatpush1.msra.mxu0 0.0
    %146 = vmatprep.subr.mxu0 0.0
    %147 = vmatpush1.msra.mxu0 0.0
    %148 = vmatprep.subr.mxu0 0.0
    %149 = vmatpush1.msra.mxu0 0.0
    %150 = vmatprep.subr.mxu0 0.0
    %151 = vmatpush1.msra.mxu0 0.0
    %152 = vmatprep.subr.mxu0 0.0
    %153 = vmatpush1.msra.mxu0 0.0
    %154 = vmatprep.subr.mxu0 0.0
    %155 = vmatpush1.msra.mxu0 0.0
    %156 = vmatprep.subr.mxu0 0.0
    %157 = vmatpush1.msra.mxu0 0.0
    %158 = vmatprep.subr.mxu0 0.0
    %159 = vmatpush1.msra.mxu0 0.0
    %160 = vmatprep.subr.mxu0 0.0
    %161 = vmatpush1.msra.mxu0 0.0
    %162 = vmatprep.subr.mxu0 0.0
    %163 = vmatpush1.msra.mxu0 0.0
    %164 = vmatprep.subr.mxu0 0.0
    %165 = vmatpush1.msra.mxu0 0.0
    %166 = vmatprep.subr.mxu0 0.0
    %167 = vmatpush1.msra.mxu0 0.0
    %168 = vmatprep.subr.mxu0 0.0
    %169 = vmatpush1.msra.mxu0 0.0
    %170 = vmatprep.mubr.f32.mxu0 0.0
    %171 = vmatmul.mubr.f32.gmra.mrb[0].mxu0 %v40
    %v172 = vpop.f32.mrb[0].mxu0
    %v173 = vadd.f32 0.0, %v172
    %v174 = vpop.f32.mrb[0].mxu0
    %v175 = vadd.f32 0.0, %v174
    %176 = vmatprep.mubr.f32.mxu0 0.0
    %177 = vmatmul.mubr.f32.gmra.mrb[0].mxu0 %v41
    %v178 = vpop.f32.mrb[0].mxu0
    %v179 = vadd.f32 0.0, %v178
    %v180 = vpop.f32.mrb[0].mxu0
    %v181 = vadd.f32 0.0, %v180
    %182 = vdwg.mxu0
    %183 = vmatprep.subr.mxu0 %v45
    %184 = vmatpush1.msra.mxu0 %v44
    %185 = vmatprep.subr.mxu0 %v49
    %186 = vmatpush1.msra.mxu0 %v48
    %187 = vmatprep.subr.mxu0 %v53
    %188 = vmatpush1.msra.mxu0 %v52
    %189 = vmatprep.subr.mxu0 %v57
    %190 = vmatpush1.msra.mxu0 %v56
    %191 = vmatprep.subr.mxu0 %v61
    %192 = vmatpush1.msra.mxu0 %v60
    %193 = vmatprep.subr.mxu0 %v65
    %194 = vmatpush1.msra.mxu0 %v64
    %195 = vmatprep.subr.mxu0 %v69
    %196 = vmatpush1.msra.mxu0 %v68
    %197 = vmatprep.subr.mxu0 %v73
    %198 = vmatpush1.msra.mxu0 %v72
    %199 = vmatprep.subr.mxu0 %v77
    %200 = vmatpush1.msra.mxu0 %v76
    %201 = vmatprep.subr.mxu0 %v81
    %202 = vmatpush1.msra.mxu0 %v80
    %203 = vmatprep.subr.mxu0 %v85
    %204 = vmatpush1.msra.mxu0 %v84
    %205 = vmatprep.subr.mxu0 %v89
    %206 = vmatpush1.msra.mxu0 %v88
    %207 = vmatprep.subr.mxu0 %v93
    %208 = vmatpush1.msra.mxu0 %v92
    %209 = vmatprep.subr.mxu0 %v97
    %210 = vmatpush1.msra.mxu0 %v96
    %211 = vmatprep.subr.mxu0 %v101
    %212 = vmatpush1.msra.mxu0 %v100
    %213 = vmatprep.subr.mxu0 %v105
    %214 = vmatpush1.msra.mxu0 %v104
    %215 = vmatprep.subr.mxu0 0.0
    %216 = vmatpush1.msra.mxu0 0.0
    %217 = vmatprep.subr.mxu0 0.0
    %218 = vmatpush1.msra.mxu0 0.0
    %219 = vmatprep.subr.mxu0 0.0
    %220 = vmatpush1.msra.mxu0 0.0
    %221 = vmatprep.subr.mxu0 0.0
    %222 = vmatpush1.msra.mxu0 0.0
    %223 = vmatprep.subr.mxu0 0.0
    %224 = vmatpush1.msra.mxu0 0.0
    %225 = vmatprep.subr.mxu0 0.0
    %226 = vmatpush1.msra.mxu0 0.0
    %227 = vmatprep.subr.mxu0 0.0
    %228 = vmatpush1.msra.mxu0 0.0
    %229 = vmatprep.subr.mxu0 0.0
    %230 = vmatpush1.msra.mxu0 0.0
    %231 = vmatprep.subr.mxu0 0.0
    %232 = vmatpush1.msra.mxu0 0.0
    %233 = vmatprep.subr.mxu0 0.0
    %234 = vmatpush1.msra.mxu0 0.0
    %235 = vmatprep.subr.mxu0 0.0
    %236 = vmatpush1.msra.mxu0 0.0
    %237 = vmatprep.subr.mxu0 0.0
    %238 = vmatpush1.msra.mxu0 0.0
    %239 = vmatprep.subr.mxu0 0.0
    %240 = vmatpush1.msra.mxu0 0.0
    %241 = vmatprep.subr.mxu0 0.0
    %242 = vmatpush1.msra.mxu0 0.0
    %243 = vmatprep.subr.mxu0 0.0
    %244 = vmatpush1.msra.mxu0 0.0
    %245 = vmatprep.subr.mxu0 0.0
    %246 = vmatpush1.msra.mxu0 0.0
    %247 = vmatprep.mubr.f32.mxu0 0.0
    %248 = vmatmul.mubr.f32.gmra.mrb[0].mxu0 %v40
    %v249 = vpop.f32.mrb[0].mxu0
    %v250 = vadd.f32 0.0, %v249
    %v251 = vpop.f32.mrb[0].mxu0
    %v252 = vadd.f32 0.0, %v251
    %253 = vmatprep.mubr.f32.mxu0 0.0
    %254 = vmatmul.mubr.f32.gmra.mrb[0].mxu0 %v41
    %v255 = vpop.f32.mrb[0].mxu0
    %v256 = vadd.f32 0.0, %v255
    %v257 = vpop.f32.mrb[0].mxu0
    %v258 = vadd.f32 0.0, %v257
    %259 = vdwg.mxu0
    %260 = vst [vmem:[#allocation5] sm:$0xff] %v173
    %261 = vst [vmem:[#allocation5 + $0x8] sm:$0xff] %v175
    %262 = vst [vmem:[#allocation5 + $0x10] sm:$0xff] %v250
    %263 = vst [vmem:[#allocation5 + $0x18] sm:$0xff] %v252
    %264 = vst [vmem:[#allocation5 + $0x20] sm:$0xff] %v179
    %265 = vst [vmem:[#allocation5 + $0x28] sm:$0xff] %v181
    %266 = vst [vmem:[#allocation5 + $0x30] sm:$0xff] %v256
    %267 = vst [vmem:[#allocation5 + $0x38] sm:$0xff] %v258
    // Predicated region
    $region14: #{tpu_custom_call.1} parent=1 // pred_check
      _
    $region15: #{tpu_custom_call.1} parent=1 // pred_check_branch
      %269 = sbr.rel (0) target = $region17
    $region16: #{tpu_custom_call.1} parent=1 // pred_region
      %s271 = ssub.s32 1024, 1024
      %272 = vsyncadd [#allocation4], %s271
      %s273 = sshll.u32 [#allocation5], 4
      %s274 = int_to_ptr.vmem [resolvable:$true] %s273
      %279 = dma.vmem_to_hbm [thread:$0]  %s274, 1024, %s2, [#allocation4], 512, 512, 32
    $region17: #{tpu_custom_call.1} parent=1 // pred_fallthru
      _
    // Predicated region
    $region18: #{tpu_custom_call.1} parent=1 // pred_check
      _
    $region19: #{tpu_custom_call.1} parent=1 // pred_check_branch
      %281 = sbr.rel (0) target = $region21
    $region20: #{tpu_custom_call.1} parent=1 // pred_region
      %282 = dma.done [#allocation4], 1024
    $region21: #{tpu_custom_call.1} parent=1 // pred_fallthru
      _
    %283 = vsyncpa [#allocation3], 1
    %284 = vsyncpa [#allocation4], 1

</llo_original>
